<compile_context>
chip_gen: v7x
topology: tpu7x:2x2x1
jax: 0.10.0
libtpu: 0.0.40
codegen_flags: <defaults>
</compile_context>

<pallas_src>
import numpy as np
import jax
import jax.numpy as jnp
from jax.experimental import pallas as pl


# ----------------------------------------------------------------------------
# Fused Pallas kernel: the entire _ResGraphConv block, single program, no grid.
# ----------------------------------------------------------------------------
def res_graph_conv_kernel(x_ref,
                          w10_ref, w11_ref, w20_ref, w21_ref,
                          d1_ref, aoff1_ref, d2_ref, aoff2_ref,
                          g1_ref, b1_ref, g2_ref, b2_ref,
                          o_ref):
    """x_ref: (B*J, C) input slab.
    w10/w11: (C, H), w20/w21: (H, C)       gconv weights (W[0], W[1]).
    d1: (B*J, 1), aoff1: (B*J, B*J)        diag row-scale / block-diag adjacency.
    d2: (B*J, 1), aoff2: (B*J, B*J)
    g1/b1: (1, H), g2/b2: (1, C)           BatchNorm affine params.
    o_ref: (B*J, C) output slab.
    """
    x = x_ref[...]                                               # (B*J, C)

    def gconv_bn_relu(h_in, w0, w1, d, aoff, gamma, beta):
        h0 = jnp.dot(h_in, w0, preferred_element_type=jnp.float32)
        h1 = jnp.dot(h_in, w1, preferred_element_type=jnp.float32)
        # diag(softmax(adj)) as a row scale (VALU, free alongside the MXU
        # matmul); off-diagonal part as one block-diagonal matmul for all B.
        g = d * h0 + jnp.dot(aoff, h1, preferred_element_type=jnp.float32)
        # gconv bias omitted: exactly cancelled by BN mean subtraction.
        mean = jnp.mean(g, axis=0, keepdims=True)
        var = jnp.mean(jnp.square(g - mean), axis=0, keepdims=True)
        y = (g - mean) * jax.lax.rsqrt(var + 1e-5) * gamma + beta
        return jnp.maximum(y, 0.0)

    h = gconv_bn_relu(x, w10_ref[...], w11_ref[...], d1_ref[...],
                      aoff1_ref[...], g1_ref[...], b1_ref[...])
    h = gconv_bn_relu(h, w20_ref[...], w21_ref[...], d2_ref[...],
                      aoff2_ref[...], g2_ref[...], b2_ref[...])
    o_ref[...] = x + h                                           # residual add


# ----------------------------------------------------------------------------
# Parameter-only glue (plain JAX): learned-adjacency softmax, batch folding.
# ----------------------------------------------------------------------------
def adj_split(adj_mask_np, e):
    """Scatter learned logits e into adj>0 positions (row-major), row-softmax,
    return (diag vector, off-diagonal matrix) — matches SemGraphConv.forward."""
    J = adj_mask_np.shape[0]
    rows, cols = np.nonzero(adj_mask_np)                 # static, row-major
    logits = jnp.full((J, J), -9e15, dtype=jnp.float32)
    logits = logits.at[rows, cols].set(e)
    a = jax.nn.softmax(logits, axis=1)
    eye = jnp.eye(J, dtype=jnp.float32)
    return jnp.diagonal(a), a * (1.0 - eye)              # (J,), (J, J)


def res_graph_conv(x, p1, p2, adj_mask_np):
    """_ResGraphConv forward.  x: (B, J, C) -> (B, J, C)."""
    B, J, C = x.shape
    H = p1["W"].shape[2]

    d1, aoff1 = adj_split(adj_mask_np, p1["e"])
    d2, aoff2 = adj_split(adj_mask_np, p2["e"])
    # Fold batch into M: tile the diagonal scale over batch and block-
    # diagonalize the off-diagonal adjacency (parameter-only, independent of x).
    d1b = jnp.tile(d1, B).reshape(B * J, 1)
    d2b = jnp.tile(d2, B).reshape(B * J, 1)
    eye_b = jnp.eye(B, dtype=jnp.float32)
    aoff1b = jnp.kron(eye_b, aoff1)                      # (B*J, B*J)
    aoff2b = jnp.kron(eye_b, aoff2)

    out = pl.pallas_call(
        res_graph_conv_kernel,
        out_shape=jax.ShapeDtypeStruct((B * J, C), jnp.float32),
        # Single program, no grid: every operand (a few KB here) lives whole in
        # VMEM and intermediates never round-trip through HBM.
        # TODO(synk): at production batch sizes add a parallel row-tile grid
        # (megacore on v7x) with a two-pass BN reduction; pointless at B=2.
    )(x.reshape(B * J, C),
      p1["W"][0], p1["W"][1], p2["W"][0], p2["W"][1],
      d1b, aoff1b, d2b, aoff2b,
      p1["gamma"].reshape(1, H), p1["beta"].reshape(1, H),
      p2["gamma"].reshape(1, C), p2["beta"].reshape(1, C))
    return out.reshape(B, J, C)


# ----------------------------------------------------------------------------
# Parameter init (mirrors SemGraphConv / BatchNorm1d init, but with random
# values so the adjacency softmax and BN affine are exercised non-trivially).
# ----------------------------------------------------------------------------
def init_graph_conv(key, cin, cout, nnz):
    kw, kb, ke, kg, kbe = jax.random.split(key, 5)
    limit = 1.414 * np.sqrt(6.0 / (cin + cout))          # xavier_uniform gain=1.414
    W = jax.random.uniform(kw, (2, cin, cout), jnp.float32, -limit, limit)
    stdv = 1.0 / np.sqrt(cout)
    b = jax.random.uniform(kb, (cout,), jnp.float32, -stdv, stdv)
    e = jax.random.uniform(ke, (nnz,), jnp.float32, 0.5, 1.5)
    gamma = jax.random.uniform(kg, (cout,), jnp.float32, 0.5, 1.5)
    beta = jax.random.uniform(kbe, (cout,), jnp.float32, -0.5, 0.5)
    return {"W": W, "b": b, "e": e, "gamma": gamma, "beta": beta}


# ----------------------------------------------------------------------------
# Pure-JAX reference (keeps the gconv bias, full (J,J) matmuls, per-batch loop
# semantics) — used to check the fused kernel.
# ----------------------------------------------------------------------------
def _sem_graph_conv_ref(x, p, adj_mask_np):
    J = adj_mask_np.shape[0]
    rows, cols = np.nonzero(adj_mask_np)
    logits = jnp.full((J, J), -9e15, dtype=jnp.float32)
    logits = logits.at[rows, cols].set(p["e"])
    a = jax.nn.softmax(logits, axis=1)
    eye = jnp.eye(J, dtype=jnp.float32)
    h0 = x @ p["W"][0]
    h1 = x @ p["W"][1]
    out = (jnp.einsum("ij,bjc->bic", a * eye, h0)
           + jnp.einsum("ij,bjc->bic", a * (1.0 - eye), h1))
    return out + p["b"][None, None, :]                   # bias kept in reference


def _graph_conv_ref(x, p, adj_mask_np):
    h = _sem_graph_conv_ref(x, p, adj_mask_np)
    mean = h.mean(axis=(0, 1), keepdims=True)            # BatchNorm1d training mode
    var = jnp.square(h - mean).mean(axis=(0, 1), keepdims=True)
    y = (h - mean) / jnp.sqrt(var + 1e-5) * p["gamma"] + p["beta"]
    return jnp.maximum(y, 0.0)


def res_graph_conv_ref(x, p1, p2, adj_mask_np):
    return x + _graph_conv_ref(_graph_conv_ref(x, p1, adj_mask_np), p2, adj_mask_np)


# ----------------------------------------------------------------------------
if __name__ == "__main__":
    B, J = 2, 16          # batch, joints/nodes
    C, H = 32, 64         # input_dim = output_dim = 32, hid_dim = 64

    # Chain skeleton with self-loops (symmetric adjacency mask).
    adj_mask = np.eye(J, dtype=np.float32)
    for i in range(J - 1):
        adj_mask[i, i + 1] = 1.0
        adj_mask[i + 1, i] = 1.0
    nnz = int(np.count_nonzero(adj_mask))

    key = jax.random.PRNGKey(0)
    k1, k2, kx = jax.random.split(key, 3)
    p1 = init_graph_conv(k1, C, H, nnz)   # _GraphConv 1: C -> H
    p2 = init_graph_conv(k2, H, C, nnz)   # _GraphConv 2: H -> C
    x = jax.random.normal(kx, (B, J, C), dtype=jnp.float32)

    out = jax.block_until_ready(res_graph_conv(x, p1, p2, adj_mask))
    assert out.shape == (B, J, C), out.shape

    ref = res_graph_conv_ref(x, p1, p2, adj_mask)
    np.testing.assert_allclose(np.asarray(out), np.asarray(ref),
                               rtol=1e-4, atol=1e-4)

    print("KERNEL_OK")
</pallas_src>

<mosaic_0001>
module attributes {stable_mosaic.version = 11 : i64} {
  func.func @res_graph_conv_kernel(%arg0: memref<32x32xf32, #tpu.memory_space<vmem>>, %arg1: memref<32x64xf32, #tpu.memory_space<vmem>>, %arg2: memref<32x64xf32, #tpu.memory_space<vmem>>, %arg3: memref<64x32xf32, #tpu.memory_space<vmem>>, %arg4: memref<64x32xf32, #tpu.memory_space<vmem>>, %arg5: memref<32x1xf32, #tpu.memory_space<vmem>>, %arg6: memref<32x32xf32, #tpu.memory_space<vmem>>, %arg7: memref<32x1xf32, #tpu.memory_space<vmem>>, %arg8: memref<32x32xf32, #tpu.memory_space<vmem>>, %arg9: memref<1x64xf32, #tpu.memory_space<vmem>>, %arg10: memref<1x64xf32, #tpu.memory_space<vmem>>, %arg11: memref<1x32xf32, #tpu.memory_space<vmem>>, %arg12: memref<1x32xf32, #tpu.memory_space<vmem>>, %arg13: memref<32x32xf32, #tpu.memory_space<vmem>>) attributes {dimension_semantics = [], scalar_prefetch = 0 : i64, scratch_operands = 0 : i64, tpu.core_type = #tpu.core_type<tc>} {
    %c0 = arith.constant 0 : index
    %c0_0 = arith.constant 0 : index
    %0 = vector.load %arg0[%c0, %c0_0] : memref<32x32xf32, #tpu.memory_space<vmem>>, vector<32x32xf32>
    %c0_1 = arith.constant 0 : index
    %c0_2 = arith.constant 0 : index
    %1 = vector.load %arg1[%c0_1, %c0_2] : memref<32x64xf32, #tpu.memory_space<vmem>>, vector<32x64xf32>
    %c0_3 = arith.constant 0 : index
    %c0_4 = arith.constant 0 : index
    %2 = vector.load %arg2[%c0_3, %c0_4] : memref<32x64xf32, #tpu.memory_space<vmem>>, vector<32x64xf32>
    %c0_5 = arith.constant 0 : index
    %c0_6 = arith.constant 0 : index
    %3 = vector.load %arg5[%c0_5, %c0_6] : memref<32x1xf32, #tpu.memory_space<vmem>>, vector<32x1xf32>
    %c0_7 = arith.constant 0 : index
    %c0_8 = arith.constant 0 : index
    %4 = vector.load %arg6[%c0_7, %c0_8] : memref<32x32xf32, #tpu.memory_space<vmem>>, vector<32x32xf32>
    %c0_9 = arith.constant 0 : index
    %c0_10 = arith.constant 0 : index
    %5 = vector.load %arg9[%c0_9, %c0_10] : memref<1x64xf32, #tpu.memory_space<vmem>>, vector<1x64xf32>
    %c0_11 = arith.constant 0 : index
    %c0_12 = arith.constant 0 : index
    %6 = vector.load %arg10[%c0_11, %c0_12] : memref<1x64xf32, #tpu.memory_space<vmem>>, vector<1x64xf32>
    %cst = arith.constant dense<0.000000e+00> : vector<32x64xf32>
    %7 = tpu.matmul %0, %1, %cst {dimension_numbers = #tpu.dot_dimension_numbers<[1], [0], [0], [1], [0, 0, 1, 1], [], []>} : vector<32x32xf32>, vector<32x64xf32>, vector<32x64xf32> -> vector<32x64xf32>
    %cst_13 = arith.constant dense<0.000000e+00> : vector<32x64xf32>
    %8 = tpu.matmul %0, %2, %cst_13 {dimension_numbers = #tpu.dot_dimension_numbers<[1], [0], [0], [1], [0, 0, 1, 1], [], []>} : vector<32x32xf32>, vector<32x64xf32>, vector<32x64xf32> -> vector<32x64xf32>
    %9 = vector.broadcast %3 : vector<32x1xf32> to vector<32x64xf32>
    %10 = arith.mulf %9, %7 : vector<32x64xf32>
    %cst_14 = arith.constant dense<0.000000e+00> : vector<32x64xf32>
    %11 = tpu.matmul %4, %8, %cst_14 {dimension_numbers = #tpu.dot_dimension_numbers<[1], [0], [0], [1], [0, 0, 1, 1], [], []>} : vector<32x32xf32>, vector<32x64xf32>, vector<32x64xf32> -> vector<32x64xf32>
    %12 = arith.addf %10, %11 : vector<32x64xf32>
    %cst_15 = arith.constant dense<0.000000e+00> : vector<64xf32>
    %13 = vector.multi_reduction <add>, %12, %cst_15 [0] : vector<32x64xf32> to vector<64xf32>
    %14 = vector.shape_cast %13 : vector<64xf32> to vector<1x64xf32>
    %cst_16 = arith.constant 3.200000e+01 : f32
    %15 = vector.broadcast %cst_16 : f32 to vector<1x64xf32>
    %16 = arith.divf %14, %15 : vector<1x64xf32>
    %17 = vector.broadcast %16 : vector<1x64xf32> to vector<32x64xf32>
    %18 = arith.subf %12, %17 : vector<32x64xf32>
    %19 = arith.mulf %18, %18 : vector<32x64xf32>
    %cst_17 = arith.constant dense<0.000000e+00> : vector<64xf32>
    %20 = vector.multi_reduction <add>, %19, %cst_17 [0] : vector<32x64xf32> to vector<64xf32>
    %21 = vector.shape_cast %20 : vector<64xf32> to vector<1x64xf32>
    %cst_18 = arith.constant 3.200000e+01 : f32
    %22 = vector.broadcast %cst_18 : f32 to vector<1x64xf32>
    %23 = arith.divf %21, %22 : vector<1x64xf32>
    %24 = vector.broadcast %16 : vector<1x64xf32> to vector<32x64xf32>
    %25 = arith.subf %12, %24 : vector<32x64xf32>
    %cst_19 = arith.constant 9.99999974E-6 : f32
    %26 = vector.broadcast %cst_19 : f32 to vector<1x64xf32>
    %27 = arith.addf %23, %26 : vector<1x64xf32>
    %28 = math.rsqrt %27 : vector<1x64xf32>
    %29 = vector.broadcast %28 : vector<1x64xf32> to vector<32x64xf32>
    %30 = arith.mulf %25, %29 : vector<32x64xf32>
    %31 = vector.broadcast %5 : vector<1x64xf32> to vector<32x64xf32>
    %32 = arith.mulf %30, %31 : vector<32x64xf32>
    %33 = vector.broadcast %6 : vector<1x64xf32> to vector<32x64xf32>
    %34 = arith.addf %32, %33 : vector<32x64xf32>
    %cst_20 = arith.constant 0.000000e+00 : f32
    %35 = vector.broadcast %cst_20 : f32 to vector<32x64xf32>
    %36 = arith.maximumf %34, %35 : vector<32x64xf32>
    %c0_21 = arith.constant 0 : index
    %c0_22 = arith.constant 0 : index
    %37 = vector.load %arg3[%c0_21, %c0_22] : memref<64x32xf32, #tpu.memory_space<vmem>>, vector<64x32xf32>
    %c0_23 = arith.constant 0 : index
    %c0_24 = arith.constant 0 : index
    %38 = vector.load %arg4[%c0_23, %c0_24] : memref<64x32xf32, #tpu.memory_space<vmem>>, vector<64x32xf32>
    %c0_25 = arith.constant 0 : index
    %c0_26 = arith.constant 0 : index
    %39 = vector.load %arg7[%c0_25, %c0_26] : memref<32x1xf32, #tpu.memory_space<vmem>>, vector<32x1xf32>
    %c0_27 = arith.constant 0 : index
    %c0_28 = arith.constant 0 : index
    %40 = vector.load %arg8[%c0_27, %c0_28] : memref<32x32xf32, #tpu.memory_space<vmem>>, vector<32x32xf32>
    %c0_29 = arith.constant 0 : index
    %c0_30 = arith.constant 0 : index
    %41 = vector.load %arg11[%c0_29, %c0_30] : memref<1x32xf32, #tpu.memory_space<vmem>>, vector<1x32xf32>
    %c0_31 = arith.constant 0 : index
    %c0_32 = arith.constant 0 : index
    %42 = vector.load %arg12[%c0_31, %c0_32] : memref<1x32xf32, #tpu.memory_space<vmem>>, vector<1x32xf32>
    %cst_33 = arith.constant dense<0.000000e+00> : vector<32x32xf32>
    %43 = tpu.matmul %36, %37, %cst_33 {dimension_numbers = #tpu.dot_dimension_numbers<[1], [0], [0], [1], [0, 0, 1, 1], [], []>} : vector<32x64xf32>, vector<64x32xf32>, vector<32x32xf32> -> vector<32x32xf32>
    %cst_34 = arith.constant dense<0.000000e+00> : vector<32x32xf32>
    %44 = tpu.matmul %36, %38, %cst_34 {dimension_numbers = #tpu.dot_dimension_numbers<[1], [0], [0], [1], [0, 0, 1, 1], [], []>} : vector<32x64xf32>, vector<64x32xf32>, vector<32x32xf32> -> vector<32x32xf32>
    %45 = vector.broadcast %39 : vector<32x1xf32> to vector<32x32xf32>
    %46 = arith.mulf %45, %43 : vector<32x32xf32>
    %cst_35 = arith.constant dense<0.000000e+00> : vector<32x32xf32>
    %47 = tpu.matmul %40, %44, %cst_35 {dimension_numbers = #tpu.dot_dimension_numbers<[1], [0], [0], [1], [0, 0, 1, 1], [], []>} : vector<32x32xf32>, vector<32x32xf32>, vector<32x32xf32> -> vector<32x32xf32>
    %48 = arith.addf %46, %47 : vector<32x32xf32>
    %cst_36 = arith.constant dense<0.000000e+00> : vector<32xf32>
    %49 = vector.multi_reduction <add>, %48, %cst_36 [0] : vector<32x32xf32> to vector<32xf32>
    %50 = vector.shape_cast %49 : vector<32xf32> to vector<1x32xf32>
    %cst_37 = arith.constant 3.200000e+01 : f32
    %51 = vector.broadcast %cst_37 : f32 to vector<1x32xf32>
    %52 = arith.divf %50, %51 : vector<1x32xf32>
    %53 = vector.broadcast %52 : vector<1x32xf32> to vector<32x32xf32>
    %54 = arith.subf %48, %53 : vector<32x32xf32>
    %55 = arith.mulf %54, %54 : vector<32x32xf32>
    %cst_38 = arith.constant dense<0.000000e+00> : vector<32xf32>
    %56 = vector.multi_reduction <add>, %55, %cst_38 [0] : vector<32x32xf32> to vector<32xf32>
    %57 = vector.shape_cast %56 : vector<32xf32> to vector<1x32xf32>
    %cst_39 = arith.constant 3.200000e+01 : f32
    %58 = vector.broadcast %cst_39 : f32 to vector<1x32xf32>
    %59 = arith.divf %57, %58 : vector<1x32xf32>
    %60 = vector.broadcast %52 : vector<1x32xf32> to vector<32x32xf32>
    %61 = arith.subf %48, %60 : vector<32x32xf32>
    %cst_40 = arith.constant 9.99999974E-6 : f32
    %62 = vector.broadcast %cst_40 : f32 to vector<1x32xf32>
    %63 = arith.addf %59, %62 : vector<1x32xf32>
    %64 = math.rsqrt %63 : vector<1x32xf32>
    %65 = vector.broadcast %64 : vector<1x32xf32> to vector<32x32xf32>
    %66 = arith.mulf %61, %65 : vector<32x32xf32>
    %67 = vector.broadcast %41 : vector<1x32xf32> to vector<32x32xf32>
    %68 = arith.mulf %66, %67 : vector<32x32xf32>
    %69 = vector.broadcast %42 : vector<1x32xf32> to vector<32x32xf32>
    %70 = arith.addf %68, %69 : vector<32x32xf32>
    %cst_41 = arith.constant 0.000000e+00 : f32
    %71 = vector.broadcast %cst_41 : f32 to vector<32x32xf32>
    %72 = arith.maximumf %70, %71 : vector<32x32xf32>
    %73 = arith.addf %0, %72 : vector<32x32xf32>
    %c0_42 = arith.constant 0 : index
    %c0_43 = arith.constant 0 : index
    %74 = vector.load %arg13[%c0_42, %c0_43] : memref<32x32xf32, #tpu.memory_space<vmem>>, vector<32x32xf32>
    tpu.vector_store %arg13[%c0_42, %c0_43], %73 {strides = array<i32>} : memref<32x32xf32, #tpu.memory_space<vmem>>, vector<32x32xf32>,
    return
  }
}

</mosaic_0001>

<llo_original>
// kernel: tpu_custom_call.1
$region0: #{tpu_custom_call.1}
  #allocation0 [shape = 'u32[]', space=smem, size = 0x4, offset = 0x4, fixed_abs, tag = 'smem constant byte address 0x4 - core index']
  #allocation1 [shape = 'u32[144,128]{1,0:T(1,128)}', space=vmem, size = 0x12000, scoped, tag = 'internal scratch']
  %s0 = inlined_call_operand.vmem [shape: f32[32,32], index: 0, kind: input, shape index: {}]
  %s1 = inlined_call_operand.vmem [shape: f32[32,64], index: 1, kind: input, shape index: {}]
  %s2 = inlined_call_operand.vmem [shape: f32[32,64], index: 2, kind: input, shape index: {}]
  %s3 = inlined_call_operand.vmem [shape: f32[64,32], index: 3, kind: input, shape index: {}]
  %s4 = inlined_call_operand.vmem [shape: f32[64,32], index: 4, kind: input, shape index: {}]
  %s5 = inlined_call_operand.vmem [shape: f32[32,1], index: 5, kind: input, shape index: {}]
  %s6 = inlined_call_operand.vmem [shape: f32[32,32], index: 6, kind: input, shape index: {}]
  %s7 = inlined_call_operand.vmem [shape: f32[32,1], index: 7, kind: input, shape index: {}]
  %s8 = inlined_call_operand.vmem [shape: f32[32,32], index: 8, kind: input, shape index: {}]
  %s9 = inlined_call_operand.vmem [shape: f32[1,64], index: 9, kind: input, shape index: {}]
  %s10 = inlined_call_operand.vmem [shape: f32[1,64], index: 10, kind: input, shape index: {}]
  %s11 = inlined_call_operand.vmem [shape: f32[1,32], index: 11, kind: input, shape index: {}]
  %s12 = inlined_call_operand.vmem [shape: f32[1,32], index: 12, kind: input, shape index: {}]
  %s13 = inlined_call_operand.hbm [shape: f32[32,32], index: 13, kind: output, shape index: {}]
  %s14 = sld [smem:[#allocation0]]
  $region62: #{tpu_custom_call.1} parent=0
    _
  %s16 = ssub.s32 1, %s14
  %s17 = scalar_select 0, %s16, %s14
  $region1: #{tpu_custom_call.1} parent=0
    #allocation2 [shape = 'u8[16384]{0}', space=vmem, size = 0x4000, scoped, tag = 'output window, operand 0, single buffered']
    #allocation3 [shape = 's32[1]{0}', space=sflag, size = 0x4, scoped, tag = 'scoped memory for tpu_custom_call.1']
    %18 = vsyncpa [#allocation3], 0
    // Predicated region
    $region2: #{tpu_custom_call.1} parent=1 // pred_check
      _
    $region3: #{tpu_custom_call.1} parent=1 // pred_check_branch
      %20 = sbr.rel (0) target = $region5
    $region4: #{tpu_custom_call.1} parent=1 // pred_region
      _
    $region5: #{tpu_custom_call.1} parent=1 // pred_fallthru
      _
    // Predicated region
    $region6: #{tpu_custom_call.1} parent=1 // pred_check
      _
    $region7: #{tpu_custom_call.1} parent=1 // pred_check_branch
      %22 = sbr.rel (0) target = $region9
    $region8: #{tpu_custom_call.1} parent=1 // pred_region
      _
    $region9: #{tpu_custom_call.1} parent=1 // pred_fallthru
      _
    // Predicated region
    $region10: #{tpu_custom_call.1} parent=1 // pred_check
      _
    $region11: #{tpu_custom_call.1} parent=1 // pred_check_branch
      %24 = sbr.rel (0) target = $region13
    $region12: #{tpu_custom_call.1} parent=1 // pred_region
      _
    $region13: #{tpu_custom_call.1} parent=1 // pred_fallthru
      _
    // Predicated region
    $region14: #{tpu_custom_call.1} parent=1 // pred_check
      _
    $region15: #{tpu_custom_call.1} parent=1 // pred_check_branch
      %26 = sbr.rel (0) target = $region17
    $region16: #{tpu_custom_call.1} parent=1 // pred_region
      _
    $region17: #{tpu_custom_call.1} parent=1 // pred_fallthru
      _
    // Predicated region
    $region18: #{tpu_custom_call.1} parent=1 // pred_check
      _
    $region19: #{tpu_custom_call.1} parent=1 // pred_check_branch
      %28 = sbr.rel (0) target = $region21
    $region20: #{tpu_custom_call.1} parent=1 // pred_region
      _
    $region21: #{tpu_custom_call.1} parent=1 // pred_fallthru
      _
    // Predicated region
    $region22: #{tpu_custom_call.1} parent=1 // pred_check
      _
    $region23: #{tpu_custom_call.1} parent=1 // pred_check_branch
      %30 = sbr.rel (0) target = $region25
    $region24: #{tpu_custom_call.1} parent=1 // pred_region
      _
    $region25: #{tpu_custom_call.1} parent=1 // pred_fallthru
      _
    // Predicated region
    $region26: #{tpu_custom_call.1} parent=1 // pred_check
      _
    $region27: #{tpu_custom_call.1} parent=1 // pred_check_branch
      %32 = sbr.rel (0) target = $region29
    $region28: #{tpu_custom_call.1} parent=1 // pred_region
      _
    $region29: #{tpu_custom_call.1} parent=1 // pred_fallthru
      _
    // Predicated region
    $region30: #{tpu_custom_call.1} parent=1 // pred_check
      _
    $region31: #{tpu_custom_call.1} parent=1 // pred_check_branch
      %34 = sbr.rel (0) target = $region33
    $region32: #{tpu_custom_call.1} parent=1 // pred_region
      _
    $region33: #{tpu_custom_call.1} parent=1 // pred_fallthru
      _
    // Predicated region
    $region34: #{tpu_custom_call.1} parent=1 // pred_check
      _
    $region35: #{tpu_custom_call.1} parent=1 // pred_check_branch
      %36 = sbr.rel (0) target = $region37
    $region36: #{tpu_custom_call.1} parent=1 // pred_region
      _
    $region37: #{tpu_custom_call.1} parent=1 // pred_fallthru
      _
    // Predicated region
    $region38: #{tpu_custom_call.1} parent=1 // pred_check
      _
    $region39: #{tpu_custom_call.1} parent=1 // pred_check_branch
      %38 = sbr.rel (0) target = $region41
    $region40: #{tpu_custom_call.1} parent=1 // pred_region
      _
    $region41: #{tpu_custom_call.1} parent=1 // pred_fallthru
      _
    // Predicated region
    $region42: #{tpu_custom_call.1} parent=1 // pred_check
      _
    $region43: #{tpu_custom_call.1} parent=1 // pred_check_branch
      %40 = sbr.rel (0) target = $region45
    $region44: #{tpu_custom_call.1} parent=1 // pred_region
      _
    $region45: #{tpu_custom_call.1} parent=1 // pred_fallthru
      _
    // Predicated region
    $region46: #{tpu_custom_call.1} parent=1 // pred_check
      _
    $region47: #{tpu_custom_call.1} parent=1 // pred_check_branch
      %42 = sbr.rel (0) target = $region49
    $region48: #{tpu_custom_call.1} parent=1 // pred_region
      _
    $region49: #{tpu_custom_call.1} parent=1 // pred_fallthru
      _
    // Predicated region
    $region50: #{tpu_custom_call.1} parent=1 // pred_check
      _
    $region51: #{tpu_custom_call.1} parent=1 // pred_check_branch
      %44 = sbr.rel (0) target = $region53
    $region52: #{tpu_custom_call.1} parent=1 // pred_region
      _
    $region53: #{tpu_custom_call.1} parent=1 // pred_fallthru
      _
    %v45 = vld [vmem:[%s0] sm:$0xff]
    %v46 = vld [vmem:[%s0 + $0x8] sm:$0xff]
    %v47 = vld [vmem:[%s0 + $0x10] sm:$0xff]
    %v48 = vld [vmem:[%s0 + $0x18] sm:$0xff]
    %v49 = vld [vmem:[%s1] sm:$0xff]
    %v50 = vld [vmem:[%s1 + $0x8] sm:$0xff]
    %v51 = vld [vmem:[%s1 + $0x10] sm:$0xff]
    %v52 = vld [vmem:[%s1 + $0x18] sm:$0xff]
    %v53 = vld [vmem:[%s2] sm:$0xff]
    %v54 = vld [vmem:[%s2 + $0x8] sm:$0xff]
    %v55 = vld [vmem:[%s2 + $0x10] sm:$0xff]
    %v56 = vld [vmem:[%s2 + $0x18] sm:$0xff]
    %v57 = vld [vmem:[%s5] sm:$0xff]
    %v58 = vld [vmem:[%s5 + $0x8] sm:$0xff]
    %v59 = vld [vmem:[%s5 + $0x10] sm:$0xff]
    %v60 = vld [vmem:[%s5 + $0x18] sm:$0xff]
    %v61 = vld [vmem:[%s6] sm:$0xff]
    %v62 = vld [vmem:[%s6 + $0x8] sm:$0xff]
    %v63 = vld [vmem:[%s6 + $0x10] sm:$0xff]
    %v64 = vld [vmem:[%s6 + $0x18] sm:$0xff]
    %v65 = vld [vmem:[%s9] sm:$0x1]
    %v66 = vld [vmem:[%s10] sm:$0x1]
    %vm67 = vcmask 261120
    %v69 = vsel %vm67, %v45, 0
    %v72 = vsel %vm67, %v46, 0
    %v75 = vsel %vm67, %v47, 0
    %v78 = vsel %vm67, %v48, 0
    %80 = vmatprep.subr.mxu0 0.0
    %81 = vmatpush1.msra.mxu0 %v49
    %82 = vmatprep.subr.mxu0 0.0
    %83 = vmatpush1.msra.mxu0 %v50
    %84 = vmatprep.subr.mxu0 0.0
    %85 = vmatpush1.msra.mxu0 %v51
    %86 = vmatprep.subr.mxu0 0.0
    %87 = vmatpush1.msra.mxu0 %v52
    %88 = vmatprep.subr.mxu0 0.0
    %89 = vmatpush1.msra.mxu0 0.0
    %90 = vmatprep.subr.mxu0 0.0
    %91 = vmatpush1.msra.mxu0 0.0
    %92 = vmatprep.subr.mxu0 0.0
    %93 = vmatpush1.msra.mxu0 0.0
    %94 = vmatprep.subr.mxu0 0.0
    %95 = vmatpush1.msra.mxu0 0.0
    %96 = vmatprep.subr.mxu0 0.0
    %97 = vmatpush1.msra.mxu0 0.0
    %98 = vmatprep.subr.mxu0 0.0
    %99 = vmatpush1.msra.mxu0 0.0
    %100 = vmatprep.subr.mxu0 0.0
    %101 = vmatpush1.msra.mxu0 0.0
    %102 = vmatprep.subr.mxu0 0.0
    %103 = vmatpush1.msra.mxu0 0.0
    %104 = vmatprep.subr.mxu0 0.0
    %105 = vmatpush1.msra.mxu0 0.0
    %106 = vmatprep.subr.mxu0 0.0
    %107 = vmatpush1.msra.mxu0 0.0
    %108 = vmatprep.subr.mxu0 0.0
    %109 = vmatpush1.msra.mxu0 0.0
    %110 = vmatprep.subr.mxu0 0.0
    %111 = vmatpush1.msra.mxu0 0.0
    %112 = vmatprep.subr.mxu0 0.0
    %113 = vmatpush1.msra.mxu0 0.0
    %114 = vmatprep.subr.mxu0 0.0
    %115 = vmatpush1.msra.mxu0 0.0
    %116 = vmatprep.subr.mxu0 0.0
    %117 = vmatpush1.msra.mxu0 0.0
    %118 = vmatprep.subr.mxu0 0.0
    %119 = vmatpush1.msra.mxu0 0.0
    %120 = vmatprep.subr.mxu0 0.0
    %121 = vmatpush1.msra.mxu0 0.0
    %122 = vmatprep.subr.mxu0 0.0
    %123 = vmatpush1.msra.mxu0 0.0
    %124 = vmatprep.subr.mxu0 0.0
    %125 = vmatpush1.msra.mxu0 0.0
    %126 = vmatprep.subr.mxu0 0.0
    %127 = vmatpush1.msra.mxu0 0.0
    %128 = vmatprep.subr.mxu0 0.0
    %129 = vmatpush1.msra.mxu0 0.0
    %130 = vmatprep.subr.mxu0 0.0
    %131 = vmatpush1.msra.mxu0 0.0
    %132 = vmatprep.subr.mxu0 0.0
    %133 = vmatpush1.msra.mxu0 0.0
    %134 = vmatprep.subr.mxu0 0.0
    %135 = vmatpush1.msra.mxu0 0.0
    %136 = vmatprep.subr.mxu0 0.0
    %137 = vmatpush1.msra.mxu0 0.0
    %138 = vmatprep.subr.mxu0 0.0
    %139 = vmatpush1.msra.mxu0 0.0
    %140 = vmatprep.subr.mxu0 0.0
    %141 = vmatpush1.msra.mxu0 0.0
    %142 = vmatprep.subr.mxu0 0.0
    %143 = vmatpush1.msra.mxu0 0.0
    %144 = vmatprep.mubr.f32.mxu0 0.0
    %145 = vmatmul.mubr.f32.gmra.mrb[0].mxu0 %v69
    %v146 = vpop.f32.mrb[0].mxu0
    %v147 = vadd.f32 0.0, %v146
    %v148 = vpop.f32.mrb[0].mxu0
    %149 = vmatprep.mubr.f32.mxu0 0.0
    %150 = vmatmul.mubr.f32.gmra.mrb[0].mxu0 %v72
    %v151 = vpop.f32.mrb[0].mxu0
    %v152 = vadd.f32 0.0, %v151
    %v153 = vpop.f32.mrb[0].mxu0
    %154 = vmatprep.mubr.f32.mxu0 0.0
    %155 = vmatmul.mubr.f32.gmra.mrb[0].mxu0 %v75
    %v156 = vpop.f32.mrb[0].mxu0
    %v157 = vadd.f32 0.0, %v156
    %v158 = vpop.f32.mrb[0].mxu0
    %159 = vmatprep.mubr.f32.mxu0 0.0
    %160 = vmatmul.mubr.f32.gmra.mrb[0].mxu0 %v78
    %v161 = vpop.f32.mrb[0].mxu0
    %v162 = vadd.f32 0.0, %v161
    %v163 = vpop.f32.mrb[0].mxu0
    %164 = vdwg.mxu0
    %165 = vmatprep.subr.mxu0 0.0
    %166 = vmatpush1.msra.mxu0 %v53
    %167 = vmatprep.subr.mxu0 0.0
    %168 = vmatpush1.msra.mxu0 %v54
    %169 = vmatprep.subr.mxu0 0.0
    %170 = vmatpush1.msra.mxu0 %v55
    %171 = vmatprep.subr.mxu0 0.0
    %172 = vmatpush1.msra.mxu0 %v56
    %173 = vmatprep.subr.mxu0 0.0
    %174 = vmatpush1.msra.mxu0 0.0
    %175 = vmatprep.subr.mxu0 0.0
    %176 = vmatpush1.msra.mxu0 0.0
    %177 = vmatprep.subr.mxu0 0.0
    %178 = vmatpush1.msra.mxu0 0.0
    %179 = vmatprep.subr.mxu0 0.0
    %180 = vmatpush1.msra.mxu0 0.0
    %181 = vmatprep.subr.mxu0 0.0
    %182 = vmatpush1.msra.mxu0 0.0
    %183 = vmatprep.subr.mxu0 0.0
    %184 = vmatpush1.msra.mxu0 0.0
    %185 = vmatprep.subr.mxu0 0.0
    %186 = vmatpush1.msra.mxu0 0.0
    %187 = vmatprep.subr.mxu0 0.0
    %188 = vmatpush1.msra.mxu0 0.0
    %189 = vmatprep.subr.mxu0 0.0
    %190 = vmatpush1.msra.mxu0 0.0
    %191 = vmatprep.subr.mxu0 0.0
    %192 = vmatpush1.msra.mxu0 0.0
    %193 = vmatprep.subr.mxu0 0.0
    %194 = vmatpush1.msra.mxu0 0.0
    %195 = vmatprep.subr.mxu0 0.0
    %196 = vmatpush1.msra.mxu0 0.0
    %197 = vmatprep.subr.mxu0 0.0
    %198 = vmatpush1.msra.mxu0 0.0
    %199 = vmatprep.subr.mxu0 0.0
    %200 = vmatpush1.msra.mxu0 0.0
    %201 = vmatprep.subr.mxu0 0.0
    %202 = vmatpush1.msra.mxu0 0.0
    %203 = vmatprep.subr.mxu0 0.0
    %204 = vmatpush1.msra.mxu0 0.0
    %205 = vmatprep.subr.mxu0 0.0
    %206 = vmatpush1.msra.mxu0 0.0
    %207 = vmatprep.subr.mxu0 0.0
    %208 = vmatpush1.msra.mxu0 0.0
    %209 = vmatprep.subr.mxu0 0.0
    %210 = vmatpush1.msra.mxu0 0.0
    %211 = vmatprep.subr.mxu0 0.0
    %212 = vmatpush1.msra.mxu0 0.0
    %213 = vmatprep.subr.mxu0 0.0
    %214 = vmatpush1.msra.mxu0 0.0
    %215 = vmatprep.subr.mxu0 0.0
    %216 = vmatpush1.msra.mxu0 0.0
    %217 = vmatprep.subr.mxu0 0.0
    %218 = vmatpush1.msra.mxu0 0.0
    %219 = vmatprep.subr.mxu0 0.0
    %220 = vmatpush1.msra.mxu0 0.0
    %221 = vmatprep.subr.mxu0 0.0
    %222 = vmatpush1.msra.mxu0 0.0
    %223 = vmatprep.subr.mxu0 0.0
    %224 = vmatpush1.msra.mxu0 0.0
    %225 = vmatprep.subr.mxu0 0.0
    %226 = vmatpush1.msra.mxu0 0.0
    %227 = vmatprep.subr.mxu0 0.0
    %228 = vmatpush1.msra.mxu0 0.0
    %229 = vmatprep.mubr.f32.mxu0 0.0
    %230 = vmatmul.mubr.f32.gmra.mrb[0].mxu0 %v69
    %v231 = vpop.f32.mrb[0].mxu0
    %v232 = vadd.f32 0.0, %v231
    %v233 = vpop.f32.mrb[0].mxu0
    %234 = vmatprep.mubr.f32.mxu0 0.0
    %235 = vmatmul.mubr.f32.gmra.mrb[0].mxu0 %v72
    %v236 = vpop.f32.mrb[0].mxu0
    %v237 = vadd.f32 0.0, %v236
    %v238 = vpop.f32.mrb[0].mxu0
    %239 = vmatprep.mubr.f32.mxu0 0.0
    %240 = vmatmul.mubr.f32.gmra.mrb[0].mxu0 %v75
    %v241 = vpop.f32.mrb[0].mxu0
    %v242 = vadd.f32 0.0, %v241
    %v243 = vpop.f32.mrb[0].mxu0
    %244 = vmatprep.mubr.f32.mxu0 0.0
    %245 = vmatmul.mubr.f32.gmra.mrb[0].mxu0 %v78
    %v246 = vpop.f32.mrb[0].mxu0
    %v247 = vadd.f32 0.0, %v246
    %v248 = vpop.f32.mrb[0].mxu0
    %249 = vdwg.mxu0
    %251 = vset.pattern.permute.xlu0 0
    %252 = vperm.xlu0 %251, %v57
    %v253 = vpop.permute.xlu0 %252
    %256 = vset.pattern.permute.xlu0 0
    %257 = vperm.xlu0 %256, %v58
    %v258 = vpop.permute.xlu0 %257
    %261 = vset.pattern.permute.xlu0 0
    %262 = vperm.xlu0 %261, %v59
    %v263 = vpop.permute.xlu0 %262
    %266 = vset.pattern.permute.xlu0 0
    %267 = vperm.xlu0 %266, %v60
    %v268 = vpop.permute.xlu0 %267
    %v270 = vmul.f32 %v253, %v147
    %v271 = vmul.f32 %v258, %v152
    %v272 = vmul.f32 %v263, %v157
    %v273 = vmul.f32 %v268, %v162
    %v275 = vsel %vm67, %v61, 0
    %v278 = vsel %vm67, %v62, 0
    %v281 = vsel %vm67, %v63, 0
    %v284 = vsel %vm67, %v64, 0
    %286 = vmatprep.subr.mxu0 0.0
    %287 = vmatpush1.msra.mxu0 %v232
    %288 = vmatprep.subr.mxu0 0.0
    %289 = vmatpush1.msra.mxu0 %v237
    %290 = vmatprep.subr.mxu0 0.0
    %291 = vmatpush1.msra.mxu0 %v242
    %292 = vmatprep.subr.mxu0 0.0
    %293 = vmatpush1.msra.mxu0 %v247
    %294 = vmatprep.subr.mxu0 0.0
    %295 = vmatpush1.msra.mxu0 0.0
    %296 = vmatprep.subr.mxu0 0.0
    %297 = vmatpush1.msra.mxu0 0.0
    %298 = vmatprep.subr.mxu0 0.0
    %299 = vmatpush1.msra.mxu0 0.0
    %300 = vmatprep.subr.mxu0 0.0
    %301 = vmatpush1.msra.mxu0 0.0
    %302 = vmatprep.subr.mxu0 0.0
    %303 = vmatpush1.msra.mxu0 0.0
    %304 = vmatprep.subr.mxu0 0.0
    %305 = vmatpush1.msra.mxu0 0.0
    %306 = vmatprep.subr.mxu0 0.0
    %307 = vmatpush1.msra.mxu0 0.0
    %308 = vmatprep.subr.mxu0 0.0
    %309 = vmatpush1.msra.mxu0 0.0
    %310 = vmatprep.subr.mxu0 0.0
    %311 = vmatpush1.msra.mxu0 0.0
    %312 = vmatprep.subr.mxu0 0.0
    %313 = vmatpush1.msra.mxu0 0.0
    %314 = vmatprep.subr.mxu0 0.0
    %315 = vmatpush1.msra.mxu0 0.0
    %316 = vmatprep.subr.mxu0 0.0
    %317 = vmatpush1.msra.mxu0 0.0
    %318 = vmatprep.subr.mxu0 0.0
    %319 = vmatpush1.msra.mxu0 0.0
    %320 = vmatprep.subr.mxu0 0.0
    %321 = vmatpush1.msra.mxu0 0.0
    %322 = vmatprep.subr.mxu0 0.0
    %323 = vmatpush1.msra.mxu0 0.0
    %324 = vmatprep.subr.mxu0 0.0
    %325 = vmatpush1.msra.mxu0 0.0
    %326 = vmatprep.subr.mxu0 0.0
    %327 = vmatpush1.msra.mxu0 0.0
    %328 = vmatprep.subr.mxu0 0.0
    %329 = vmatpush1.msra.mxu0 0.0
    %330 = vmatprep.subr.mxu0 0.0
    %331 = vmatpush1.msra.mxu0 0.0
    %332 = vmatprep.subr.mxu0 0.0
    %333 = vmatpush1.msra.mxu0 0.0
    %334 = vmatprep.subr.mxu0 0.0
    %335 = vmatpush1.msra.mxu0 0.0
    %336 = vmatprep.subr.mxu0 0.0
    %337 = vmatpush1.msra.mxu0 0.0
    %338 = vmatprep.subr.mxu0 0.0
    %339 = vmatpush1.msra.mxu0 0.0
    %340 = vmatprep.subr.mxu0 0.0
    %341 = vmatpush1.msra.mxu0 0.0
    %342 = vmatprep.subr.mxu0 0.0
    %343 = vmatpush1.msra.mxu0 0.0
    %344 = vmatprep.subr.mxu0 0.0
    %345 = vmatpush1.msra.mxu0 0.0
    %346 = vmatprep.subr.mxu0 0.0
    %347 = vmatpush1.msra.mxu0 0.0
    %348 = vmatprep.subr.mxu0 0.0
    %349 = vmatpush1.msra.mxu0 0.0
    %350 = vmatprep.mubr.f32.mxu0 0.0
    %351 = vmatmul.mubr.f32.gmra.mrb[0].mxu0 %v275
    %v352 = vpop.f32.mrb[0].mxu0
    %v353 = vadd.f32 0.0, %v352
    %v354 = vpop.f32.mrb[0].mxu0
    %355 = vmatprep.mubr.f32.mxu0 0.0
    %356 = vmatmul.mubr.f32.gmra.mrb[0].mxu0 %v278
    %v357 = vpop.f32.mrb[0].mxu0
    %v358 = vadd.f32 0.0, %v357
    %v359 = vpop.f32.mrb[0].mxu0
    %360 = vmatprep.mubr.f32.mxu0 0.0
    %361 = vmatmul.mubr.f32.gmra.mrb[0].mxu0 %v281
    %v362 = vpop.f32.mrb[0].mxu0
    %v363 = vadd.f32 0.0, %v362
    %v364 = vpop.f32.mrb[0].mxu0
    %365 = vmatprep.mubr.f32.mxu0 0.0
    %366 = vmatmul.mubr.f32.gmra.mrb[0].mxu0 %v284
    %v367 = vpop.f32.mrb[0].mxu0
    %v368 = vadd.f32 0.0, %v367
    %v369 = vpop.f32.mrb[0].mxu0
    %370 = vdwg.mxu0
    %v371 = vadd.f32 %v270, %v353
    %v372 = vadd.f32 %v271, %v358
    %v373 = vadd.f32 %v272, %v363
    %v374 = vadd.f32 %v273, %v368
    %vm375 = vcmask 523264
    %v376 = vsel %vm375, %v371, 0.0
    %v377 = vsel %vm375, %v372, 0.0
    %v378 = vadd.f32 %v376, %v377
    %v379 = vsel %vm375, %v373, 0.0
    %v380 = vadd.f32 %v378, %v379
    %v381 = vsel %vm375, %v374, 0.0
    %v382 = vadd.f32 %v380, %v381
    %v383 = vrot.slane %v382, 4
    %v384 = vadd.f32 %v382, %v383
    %v385 = vrot.slane %v384, 2
    %v386 = vadd.f32 %v384, %v385
    %v387 = vrot.slane %v386, 1
    %v388 = vadd.f32 %v386, %v387
    %v389 = vrcp.pop 32.0
    %v390 = vmul.f32 %v388, %v389
    %v391 = vsub.f32 %v371, %v390
    %v392 = vsub.f32 %v372, %v390
    %v393 = vsub.f32 %v373, %v390
    %v394 = vsub.f32 %v374, %v390
    %v395 = vmul.f32 %v391, %v391
    %v396 = vmul.f32 %v392, %v392
    %v397 = vmul.f32 %v393, %v393
    %v398 = vmul.f32 %v394, %v394
    %v399 = vsel %vm375, %v395, 0.0
    %v400 = vsel %vm375, %v396, 0.0
    %v401 = vadd.f32 %v399, %v400
    %v402 = vsel %vm375, %v397, 0.0
    %v403 = vadd.f32 %v401, %v402
    %v404 = vsel %vm375, %v398, 0.0
    %v405 = vadd.f32 %v403, %v404
    %v406 = vrot.slane %v405, 4
    %v407 = vadd.f32 %v405, %v406
    %v408 = vrot.slane %v407, 2
    %v409 = vadd.f32 %v407, %v408
    %v410 = vrot.slane %v409, 1
    %v411 = vadd.f32 %v409, %v410
    %v412 = vmul.f32 %v411, %v389
    %v413 = vadd.f32 %v412, 1e-05
    %v414 = vrsqrt.pop %v413
    %v415 = vmul.f32 %v391, %v414
    %v416 = vmul.f32 %v392, %v414
    %v417 = vmul.f32 %v393, %v414
    %v418 = vmul.f32 %v394, %v414
    %v420 = vlaneseq
    %v421 = vshrl.u32 %v420, 7
    %v422 = vsub.s32 0, %v421
    %v423 = vrot.slane %v65, %v422
    %v425 = vmul.f32 %v415, %v423
    %v426 = vmul.f32 %v416, %v423
    %v427 = vmul.f32 %v417, %v423
    %v428 = vmul.f32 %v418, %v423
    %v430 = vlaneseq
    %v431 = vshrl.u32 %v430, 7
    %v432 = vsub.s32 0, %v431
    %v433 = vrot.slane %v66, %v432
    %v435 = vadd.f32 %v425, %v433
    %v436 = vadd.f32 %v426, %v433
    %v437 = vadd.f32 %v427, %v433
    %v438 = vadd.f32 %v428, %v433
    %v439 = vmax.f32 %v435, 0.0
    %v440 = vmax.f32 %v436, 0.0
    %v441 = vmax.f32 %v437, 0.0
    %v442 = vmax.f32 %v438, 0.0
    %v443 = vld [vmem:[%s3] sm:$0xff]
    %v444 = vld [vmem:[%s3 + $0x8] sm:$0xff]
    %v445 = vld [vmem:[%s3 + $0x10] sm:$0xff]
    %v446 = vld [vmem:[%s3 + $0x18] sm:$0xff]
    %v447 = vld [vmem:[%s3 + $0x20] sm:$0xff]
    %v448 = vld [vmem:[%s3 + $0x28] sm:$0xff]
    %v449 = vld [vmem:[%s3 + $0x30] sm:$0xff]
    %v450 = vld [vmem:[%s3 + $0x38] sm:$0xff]
    %v451 = vld [vmem:[%s4] sm:$0xff]
    %v452 = vld [vmem:[%s4 + $0x8] sm:$0xff]
    %v453 = vld [vmem:[%s4 + $0x10] sm:$0xff]
    %v454 = vld [vmem:[%s4 + $0x18] sm:$0xff]
    %v455 = vld [vmem:[%s4 + $0x20] sm:$0xff]
    %v456 = vld [vmem:[%s4 + $0x28] sm:$0xff]
    %v457 = vld [vmem:[%s4 + $0x30] sm:$0xff]
    %v458 = vld [vmem:[%s4 + $0x38] sm:$0xff]
    %v459 = vld [vmem:[%s7] sm:$0xff]
    %v460 = vld [vmem:[%s7 + $0x8] sm:$0xff]
    %v461 = vld [vmem:[%s7 + $0x10] sm:$0xff]
    %v462 = vld [vmem:[%s7 + $0x18] sm:$0xff]
    %v463 = vld [vmem:[%s8] sm:$0xff]
    %v464 = vld [vmem:[%s8 + $0x8] sm:$0xff]
    %v465 = vld [vmem:[%s8 + $0x10] sm:$0xff]
    %v466 = vld [vmem:[%s8 + $0x18] sm:$0xff]
    %v467 = vld [vmem:[%s11] sm:$0x1]
    %v468 = vld [vmem:[%s12] sm:$0x1]
    %v470 = vsel %vm375, %v439, 0
    %v473 = vsel %vm375, %v440, 0
    %v476 = vsel %vm375, %v441, 0
    %v479 = vsel %vm375, %v442, 0
    %481 = vmatprep.subr.mxu0 0.0
    %482 = vmatpush1.msra.mxu0 %v443
    %483 = vmatprep.subr.mxu0 0.0
    %484 = vmatpush1.msra.mxu0 %v444
    %485 = vmatprep.subr.mxu0 0.0
    %486 = vmatpush1.msra.mxu0 %v445
    %487 = vmatprep.subr.mxu0 0.0
    %488 = vmatpush1.msra.mxu0 %v446
    %489 = vmatprep.subr.mxu0 0.0
    %490 = vmatpush1.msra.mxu0 %v447
    %491 = vmatprep.subr.mxu0 0.0
    %492 = vmatpush1.msra.mxu0 %v448
    %493 = vmatprep.subr.mxu0 0.0
    %494 = vmatpush1.msra.mxu0 %v449
    %495 = vmatprep.subr.mxu0 0.0
    %496 = vmatpush1.msra.mxu0 %v450
    %497 = vmatprep.subr.mxu0 0.0
    %498 = vmatpush1.msra.mxu0 0.0
    %499 = vmatprep.subr.mxu0 0.0
    %500 = vmatpush1.msra.mxu0 0.0
    %501 = vmatprep.subr.mxu0 0.0
    %502 = vmatpush1.msra.mxu0 0.0
    %503 = vmatprep.subr.mxu0 0.0
    %504 = vmatpush1.msra.mxu0 0.0
    %505 = vmatprep.subr.mxu0 0.0
    %506 = vmatpush1.msra.mxu0 0.0
    %507 = vmatprep.subr.mxu0 0.0
    %508 = vmatpush1.msra.mxu0 0.0
    %509 = vmatprep.subr.mxu0 0.0
    %510 = vmatpush1.msra.mxu0 0.0
    %511 = vmatprep.subr.mxu0 0.0
    %512 = vmatpush1.msra.mxu0 0.0
    %513 = vmatprep.subr.mxu0 0.0
    %514 = vmatpush1.msra.mxu0 0.0
    %515 = vmatprep.subr.mxu0 0.0
    %516 = vmatpush1.msra.mxu0 0.0
    %517 = vmatprep.subr.mxu0 0.0
    %518 = vmatpush1.msra.mxu0 0.0
    %519 = vmatprep.subr.mxu0 0.0
    %520 = vmatpush1.msra.mxu0 0.0
    %521 = vmatprep.subr.mxu0 0.0
    %522 = vmatpush1.msra.mxu0 0.0
    %523 = vmatprep.subr.mxu0 0.0
    %524 = vmatpush1.msra.mxu0 0.0
    %525 = vmatprep.subr.mxu0 0.0
    %526 = vmatpush1.msra.mxu0 0.0
    %527 = vmatprep.subr.mxu0 0.0
    %528 = vmatpush1.msra.mxu0 0.0
    %529 = vmatprep.subr.mxu0 0.0
    %530 = vmatpush1.msra.mxu0 0.0
    %531 = vmatprep.subr.mxu0 0.0
    %532 = vmatpush1.msra.mxu0 0.0
    %533 = vmatprep.subr.mxu0 0.0
    %534 = vmatpush1.msra.mxu0 0.0
    %535 = vmatprep.subr.mxu0 0.0
    %536 = vmatpush1.msra.mxu0 0.0
    %537 = vmatprep.subr.mxu0 0.0
    %538 = vmatpush1.msra.mxu0 0.0
    %539 = vmatprep.subr.mxu0 0.0
    %540 = vmatpush1.msra.mxu0 0.0
    %541 = vmatprep.subr.mxu0 0.0
    %542 = vmatpush1.msra.mxu0 0.0
    %543 = vmatprep.subr.mxu0 0.0
    %544 = vmatpush1.msra.mxu0 0.0
    %545 = vmatprep.mubr.f32.mxu0 0.0
    %546 = vmatmul.mubr.f32.gmra.mrb[0].mxu0 %v470
    %v547 = vpop.f32.mrb[0].mxu0
    %v548 = vadd.f32 0.0, %v547
    %v549 = vpop.f32.mrb[0].mxu0
    %550 = vmatprep.mubr.f32.mxu0 0.0
    %551 = vmatmul.mubr.f32.gmra.mrb[0].mxu0 %v473
    %v552 = vpop.f32.mrb[0].mxu0
    %v553 = vadd.f32 0.0, %v552
    %v554 = vpop.f32.mrb[0].mxu0
    %555 = vmatprep.mubr.f32.mxu0 0.0
    %556 = vmatmul.mubr.f32.gmra.mrb[0].mxu0 %v476
    %v557 = vpop.f32.mrb[0].mxu0
    %v558 = vadd.f32 0.0, %v557
    %v559 = vpop.f32.mrb[0].mxu0
    %560 = vmatprep.mubr.f32.mxu0 0.0
    %561 = vmatmul.mubr.f32.gmra.mrb[0].mxu0 %v479
    %v562 = vpop.f32.mrb[0].mxu0
    %v563 = vadd.f32 0.0, %v562
    %v564 = vpop.f32.mrb[0].mxu0
    %565 = vdwg.mxu0
    %566 = vmatprep.subr.mxu0 0.0
    %567 = vmatpush1.msra.mxu0 %v451
    %568 = vmatprep.subr.mxu0 0.0
    %569 = vmatpush1.msra.mxu0 %v452
    %570 = vmatprep.subr.mxu0 0.0
    %571 = vmatpush1.msra.mxu0 %v453
    %572 = vmatprep.subr.mxu0 0.0
    %573 = vmatpush1.msra.mxu0 %v454
    %574 = vmatprep.subr.mxu0 0.0
    %575 = vmatpush1.msra.mxu0 %v455
    %576 = vmatprep.subr.mxu0 0.0
    %577 = vmatpush1.msra.mxu0 %v456
    %578 = vmatprep.subr.mxu0 0.0
    %579 = vmatpush1.msra.mxu0 %v457
    %580 = vmatprep.subr.mxu0 0.0
    %581 = vmatpush1.msra.mxu0 %v458
    %582 = vmatprep.subr.mxu0 0.0
    %583 = vmatpush1.msra.mxu0 0.0
    %584 = vmatprep.subr.mxu0 0.0
    %585 = vmatpush1.msra.mxu0 0.0
    %586 = vmatprep.subr.mxu0 0.0
    %587 = vmatpush1.msra.mxu0 0.0
    %588 = vmatprep.subr.mxu0 0.0
    %589 = vmatpush1.msra.mxu0 0.0
    %590 = vmatprep.subr.mxu0 0.0
    %591 = vmatpush1.msra.mxu0 0.0
    %592 = vmatprep.subr.mxu0 0.0
    %593 = vmatpush1.msra.mxu0 0.0
    %594 = vmatprep.subr.mxu0 0.0
    %595 = vmatpush1.msra.mxu0 0.0
    %596 = vmatprep.subr.mxu0 0.0
    %597 = vmatpush1.msra.mxu0 0.0
    %598 = vmatprep.subr.mxu0 0.0
    %599 = vmatpush1.msra.mxu0 0.0
    %600 = vmatprep.subr.mxu0 0.0
    %601 = vmatpush1.msra.mxu0 0.0
    %602 = vmatprep.subr.mxu0 0.0
    %603 = vmatpush1.msra.mxu0 0.0
    %604 = vmatprep.subr.mxu0 0.0
    %605 = vmatpush1.msra.mxu0 0.0
    %606 = vmatprep.subr.mxu0 0.0
    %607 = vmatpush1.msra.mxu0 0.0
    %608 = vmatprep.subr.mxu0 0.0
    %609 = vmatpush1.msra.mxu0 0.0
    %610 = vmatprep.subr.mxu0 0.0
    %611 = vmatpush1.msra.mxu0 0.0
    %612 = vmatprep.subr.mxu0 0.0
    %613 = vmatpush1.msra.mxu0 0.0
    %614 = vmatprep.subr.mxu0 0.0
    %615 = vmatpush1.msra.mxu0 0.0
    %616 = vmatprep.subr.mxu0 0.0
    %617 = vmatpush1.msra.mxu0 0.0
    %618 = vmatprep.subr.mxu0 0.0
    %619 = vmatpush1.msra.mxu0 0.0
    %620 = vmatprep.subr.mxu0 0.0
    %621 = vmatpush1.msra.mxu0 0.0
    %622 = vmatprep.subr.mxu0 0.0
    %623 = vmatpush1.msra.mxu0 0.0
    %624 = vmatprep.subr.mxu0 0.0
    %625 = vmatpush1.msra.mxu0 0.0
    %626 = vmatprep.subr.mxu0 0.0
    %627 = vmatpush1.msra.mxu0 0.0
    %628 = vmatprep.subr.mxu0 0.0
    %629 = vmatpush1.msra.mxu0 0.0
    %630 = vmatprep.mubr.f32.mxu0 0.0
    %631 = vmatmul.mubr.f32.gmra.mrb[0].mxu0 %v470
    %v632 = vpop.f32.mrb[0].mxu0
    %v633 = vadd.f32 0.0, %v632
    %v634 = vpop.f32.mrb[0].mxu0
    %635 = vmatprep.mubr.f32.mxu0 0.0
    %636 = vmatmul.mubr.f32.gmra.mrb[0].mxu0 %v473
    %v637 = vpop.f32.mrb[0].mxu0
    %v638 = vadd.f32 0.0, %v637
    %v639 = vpop.f32.mrb[0].mxu0
    %640 = vmatprep.mubr.f32.mxu0 0.0
    %641 = vmatmul.mubr.f32.gmra.mrb[0].mxu0 %v476
    %v642 = vpop.f32.mrb[0].mxu0
    %v643 = vadd.f32 0.0, %v642
    %v644 = vpop.f32.mrb[0].mxu0
    %645 = vmatprep.mubr.f32.mxu0 0.0
    %646 = vmatmul.mubr.f32.gmra.mrb[0].mxu0 %v479
    %v647 = vpop.f32.mrb[0].mxu0
    %v648 = vadd.f32 0.0, %v647
    %v649 = vpop.f32.mrb[0].mxu0
    %650 = vdwg.mxu0
    %652 = vset.pattern.permute.xlu0 0
    %653 = vperm.xlu0 %652, %v459
    %v654 = vpop.permute.xlu0 %653
    %657 = vset.pattern.permute.xlu0 0
    %658 = vperm.xlu0 %657, %v460
    %v659 = vpop.permute.xlu0 %658
    %662 = vset.pattern.permute.xlu0 0
    %663 = vperm.xlu0 %662, %v461
    %v664 = vpop.permute.xlu0 %663
    %667 = vset.pattern.permute.xlu0 0
    %668 = vperm.xlu0 %667, %v462
    %v669 = vpop.permute.xlu0 %668
    %v671 = vmul.f32 %v654, %v548
    %v672 = vmul.f32 %v659, %v553
    %v673 = vmul.f32 %v664, %v558
    %v674 = vmul.f32 %v669, %v563
    %v676 = vsel %vm67, %v463, 0
    %v679 = vsel %vm67, %v464, 0
    %v682 = vsel %vm67, %v465, 0
    %v685 = vsel %vm67, %v466, 0
    %687 = vmatprep.subr.mxu0 0.0
    %688 = vmatpush1.msra.mxu0 %v633
    %689 = vmatprep.subr.mxu0 0.0
    %690 = vmatpush1.msra.mxu0 %v638
    %691 = vmatprep.subr.mxu0 0.0
    %692 = vmatpush1.msra.mxu0 %v643
    %693 = vmatprep.subr.mxu0 0.0
    %694 = vmatpush1.msra.mxu0 %v648
    %695 = vmatprep.subr.mxu0 0.0
    %696 = vmatpush1.msra.mxu0 0.0
    %697 = vmatprep.subr.mxu0 0.0
    %698 = vmatpush1.msra.mxu0 0.0
    %699 = vmatprep.subr.mxu0 0.0
    %700 = vmatpush1.msra.mxu0 0.0
    %701 = vmatprep.subr.mxu0 0.0
    %702 = vmatpush1.msra.mxu0 0.0
    %703 = vmatprep.subr.mxu0 0.0
    %704 = vmatpush1.msra.mxu0 0.0
    %705 = vmatprep.subr.mxu0 0.0
    %706 = vmatpush1.msra.mxu0 0.0
    %707 = vmatprep.subr.mxu0 0.0
    %708 = vmatpush1.msra.mxu0 0.0
    %709 = vmatprep.subr.mxu0 0.0
    %710 = vmatpush1.msra.mxu0 0.0
    %711 = vmatprep.subr.mxu0 0.0
    %712 = vmatpush1.msra.mxu0 0.0
    %713 = vmatprep.subr.mxu0 0.0
    %714 = vmatpush1.msra.mxu0 0.0
    %715 = vmatprep.subr.mxu0 0.0
    %716 = vmatpush1.msra.mxu0 0.0
    %717 = vmatprep.subr.mxu0 0.0
    %718 = vmatpush1.msra.mxu0 0.0
    %719 = vmatprep.subr.mxu0 0.0
    %720 = vmatpush1.msra.mxu0 0.0
    %721 = vmatprep.subr.mxu0 0.0
    %722 = vmatpush1.msra.mxu0 0.0
    %723 = vmatprep.subr.mxu0 0.0
    %724 = vmatpush1.msra.mxu0 0.0
    %725 = vmatprep.subr.mxu0 0.0
    %726 = vmatpush1.msra.mxu0 0.0
    %727 = vmatprep.subr.mxu0 0.0
    %728 = vmatpush1.msra.mxu0 0.0
    %729 = vmatprep.subr.mxu0 0.0
    %730 = vmatpush1.msra.mxu0 0.0
    %731 = vmatprep.subr.mxu0 0.0
    %732 = vmatpush1.msra.mxu0 0.0
    %733 = vmatprep.subr.mxu0 0.0
    %734 = vmatpush1.msra.mxu0 0.0
    %735 = vmatprep.subr.mxu0 0.0
    %736 = vmatpush1.msra.mxu0 0.0
    %737 = vmatprep.subr.mxu0 0.0
    %738 = vmatpush1.msra.mxu0 0.0
    %739 = vmatprep.subr.mxu0 0.0
    %740 = vmatpush1.msra.mxu0 0.0
    %741 = vmatprep.subr.mxu0 0.0
    %742 = vmatpush1.msra.mxu0 0.0
    %743 = vmatprep.subr.mxu0 0.0
    %744 = vmatpush1.msra.mxu0 0.0
    %745 = vmatprep.subr.mxu0 0.0
    %746 = vmatpush1.msra.mxu0 0.0
    %747 = vmatprep.subr.mxu0 0.0
    %748 = vmatpush1.msra.mxu0 0.0
    %749 = vmatprep.subr.mxu0 0.0
    %750 = vmatpush1.msra.mxu0 0.0
    %751 = vmatprep.mubr.f32.mxu0 0.0
    %752 = vmatmul.mubr.f32.gmra.mrb[0].mxu0 %v676
    %v753 = vpop.f32.mrb[0].mxu0
    %v754 = vadd.f32 0.0, %v753
    %v755 = vpop.f32.mrb[0].mxu0
    %756 = vmatprep.mubr.f32.mxu0 0.0
    %757 = vmatmul.mubr.f32.gmra.mrb[0].mxu0 %v679
    %v758 = vpop.f32.mrb[0].mxu0
    %v759 = vadd.f32 0.0, %v758
    %v760 = vpop.f32.mrb[0].mxu0
    %761 = vmatprep.mubr.f32.mxu0 0.0
    %762 = vmatmul.mubr.f32.gmra.mrb[0].mxu0 %v682
    %v763 = vpop.f32.mrb[0].mxu0
    %v764 = vadd.f32 0.0, %v763
    %v765 = vpop.f32.mrb[0].mxu0
    %766 = vmatprep.mubr.f32.mxu0 0.0
    %767 = vmatmul.mubr.f32.gmra.mrb[0].mxu0 %v685
    %v768 = vpop.f32.mrb[0].mxu0
    %v769 = vadd.f32 0.0, %v768
    %v770 = vpop.f32.mrb[0].mxu0
    %771 = vdwg.mxu0
    %v772 = vadd.f32 %v671, %v754
    %v773 = vadd.f32 %v672, %v759
    %v774 = vadd.f32 %v673, %v764
    %v775 = vadd.f32 %v674, %v769
    %v776 = vsel %vm67, %v772, 0.0
    %v777 = vsel %vm67, %v773, 0.0
    %v778 = vadd.f32 %v776, %v777
    %v779 = vsel %vm67, %v774, 0.0
    %v780 = vadd.f32 %v778, %v779
    %v781 = vsel %vm67, %v775, 0.0
    %v782 = vadd.f32 %v780, %v781
    %v783 = vrot.slane %v782, 4
    %v784 = vadd.f32 %v782, %v783
    %v785 = vrot.slane %v784, 2
    %v786 = vadd.f32 %v784, %v785
    %v787 = vrot.slane %v786, 1
    %v788 = vadd.f32 %v786, %v787
    %v789 = vmul.f32 %v788, %v389
    %v790 = vsub.f32 %v772, %v789
    %v791 = vsub.f32 %v773, %v789
    %v792 = vsub.f32 %v774, %v789
    %v793 = vsub.f32 %v775, %v789
    %v794 = vmul.f32 %v790, %v790
    %v795 = vmul.f32 %v791, %v791
    %v796 = vmul.f32 %v792, %v792
    %v797 = vmul.f32 %v793, %v793
    %v798 = vsel %vm67, %v794, 0.0
    %v799 = vsel %vm67, %v795, 0.0
    %v800 = vadd.f32 %v798, %v799
    %v801 = vsel %vm67, %v796, 0.0
    %v802 = vadd.f32 %v800, %v801
    %v803 = vsel %vm67, %v797, 0.0
    %v804 = vadd.f32 %v802, %v803
    %v805 = vrot.slane %v804, 4
    %v806 = vadd.f32 %v804, %v805
    %v807 = vrot.slane %v806, 2
    %v808 = vadd.f32 %v806, %v807
    %v809 = vrot.slane %v808, 1
    %v810 = vadd.f32 %v808, %v809
    %v811 = vmul.f32 %v810, %v389
    %v812 = vadd.f32 %v811, 1e-05
    %v813 = vrsqrt.pop %v812
    %v814 = vmul.f32 %v790, %v813
    %v815 = vmul.f32 %v791, %v813
    %v816 = vmul.f32 %v792, %v813
    %v817 = vmul.f32 %v793, %v813
    %v819 = vlaneseq
    %v820 = vshrl.u32 %v819, 7
    %v821 = vsub.s32 0, %v820
    %v822 = vrot.slane %v467, %v821
    %v824 = vmul.f32 %v814, %v822
    %v825 = vmul.f32 %v815, %v822
    %v826 = vmul.f32 %v816, %v822
    %v827 = vmul.f32 %v817, %v822
    %v829 = vlaneseq
    %v830 = vshrl.u32 %v829, 7
    %v831 = vsub.s32 0, %v830
    %v832 = vrot.slane %v468, %v831
    %v834 = vadd.f32 %v824, %v832
    %v835 = vadd.f32 %v825, %v832
    %v836 = vadd.f32 %v826, %v832
    %v837 = vadd.f32 %v827, %v832
    %v838 = vmax.f32 %v834, 0.0
    %v839 = vmax.f32 %v835, 0.0
    %v840 = vmax.f32 %v836, 0.0
    %v841 = vmax.f32 %v837, 0.0
    %v842 = vadd.f32 %v45, %v838
    %v843 = vadd.f32 %v46, %v839
    %v844 = vadd.f32 %v47, %v840
    %v845 = vadd.f32 %v48, %v841
    %846 = vst.msk [vmem:[#allocation2] sm:$0xff] %vm67, %v842
    %847 = vst.msk [vmem:[#allocation2 + $0x8] sm:$0xff] %vm67, %v843
    %848 = vst.msk [vmem:[#allocation2 + $0x10] sm:$0xff] %vm67, %v844
    %849 = vst.msk [vmem:[#allocation2 + $0x18] sm:$0xff] %vm67, %v845
    // Predicated region
    $region54: #{tpu_custom_call.1} parent=1 // pred_check
      _
    $region55: #{tpu_custom_call.1} parent=1 // pred_check_branch
      %851 = sbr.rel (0) target = $region57
    $region56: #{tpu_custom_call.1} parent=1 // pred_region
      %s853 = ssub.s32 512, 512
      %854 = vsyncadd [#allocation3], %s853
      %s855 = sshll.u32 [#allocation2], 4
      %s856 = int_to_ptr.vmem [resolvable:$true] %s855
      %861 = dma.vmem_to_hbm [thread:$0]  %s856, 512, %s13, [#allocation3], 128, 128, 8
    $region57: #{tpu_custom_call.1} parent=1 // pred_fallthru
      _
    // Predicated region
    $region58: #{tpu_custom_call.1} parent=1 // pred_check
      _
    $region59: #{tpu_custom_call.1} parent=1 // pred_check_branch
      %863 = sbr.rel (0) target = $region61
    $region60: #{tpu_custom_call.1} parent=1 // pred_region
      %864 = dma.done [#allocation3], 512
    $region61: #{tpu_custom_call.1} parent=1 // pred_fallthru
      _
    %865 = vsyncpa [#allocation3], 1

</llo_original>
